<compile_context>
chip_gen: v7x
topology: tpu7x:2x2x1
jax: 0.10.0
libtpu: 0.0.40
codegen_flags: <defaults>
</compile_context>

<pallas_src>
import functools

import jax
import jax.numpy as jnp
from jax import lax
from jax.experimental import pallas as pl
from jax.experimental.pallas import tpu as pltpu


# ----------------------------------------------------------------------------
# Fused kernel: per (batch-chunk, N-tile), run the packed discriminator on the
# fake and real tiles and accumulate sum(score_fake^2) + sum((score_real-1)^2)
# into a per-lane accumulator; reduce to a per-chunk scalar at the last tile.
# ----------------------------------------------------------------------------
def _fused_d_loss_kernel(xf_ref, xr_ref, w1_ref, b1_ref, w2_ref, b2f_ref,
                         b2r_ref, out_ref, acc_ref, *, n_valid, tn, need_mask):
    j = pl.program_id(1)
    nj = pl.num_programs(1)

    @pl.when(j == 0)
    def _():
        acc_ref[...] = jnp.zeros_like(acc_ref)

    w1 = w1_ref[...]                  # (M1, K1)  bf16, block-diag over GB rows
    b1 = b1_ref[...]                  # (M1, 1)   f32
    w2 = w2_ref[...]                  # (M2, M1)  bf16, block-diag
    b2f = b2f_ref[...]                # (M2, 1)   f32  (fake bias)
    b2r = b2r_ref[...]                # (M2, 1)   f32  (real bias - 1, LSGAN fold)

    def scores(x_ref, b2):
        # bf16 operands -> single-pass MXU; accumulate in f32.
        x = x_ref[...].astype(jnp.bfloat16)                       # (K1, tn)
        h = jnp.dot(w1, x, preferred_element_type=jnp.float32) + b1
        h = jnp.maximum(h, 0.2 * h)                               # LeakyReLU(0.2)
        s = jnp.dot(w2, h.astype(jnp.bfloat16),
                    preferred_element_type=jnp.float32) + b2      # (M2, tn)
        return s

    s_f = scores(xf_ref, b2f)
    s_r = scores(xr_ref, b2r)          # (s_real - 1) thanks to the folded bias
    contrib = s_f * s_f + s_r * s_r    # (M2, tn)

    if need_mask:
        # Only meaningful for the padded tail; cheap, applied uniformly.
        col = j * tn + lax.broadcasted_iota(jnp.int32, contrib.shape, 1)
        contrib = jnp.where(col < n_valid, contrib, 0.0)

    acc_ref[...] += contrib            # VPU-only in the hot loop

    @pl.when(j == nj - 1)
    def _():
        out_ref[...] = jnp.reshape(jnp.sum(acc_ref[...]), (1, 1, 1))


# ----------------------------------------------------------------------------
# Wrapper helpers
# ----------------------------------------------------------------------------
def _pick_group(batch, channels):
    """Smallest GB dividing batch with GB*channels a multiple of 8 (sublane fill)."""
    for gb in (1, 2, 4, 8):
        if batch % gb == 0 and (gb * channels) % 8 == 0:
            return gb
    return 1  # fallback: sublane-underfilled but still correct


def _pick_tile(hw, tile_n):
    """Tile width (multiple of 128) and padded HW.  Prefer an exact divisor of
    hw; otherwise pad hw up to a multiple of the tile and mask in-kernel."""
    tn0 = max(128, (min(tile_n, hw) // 128) * 128)
    if hw % 128 == 0:
        tn = tn0
        while hw % tn != 0:
            tn -= 128
        if tn >= max(128, tn0 // 2):       # decent divisor found -> no padding
            return tn, hw
    hw_pad = -(-hw // tn0) * tn0
    return tn0, hw_pad


def _block_diag(m, gb):
    r, c = m.shape
    out = jnp.zeros((gb * r, gb * c), m.dtype)
    for g in range(gb):
        out = out.at[g * r:(g + 1) * r, g * c:(g + 1) * c].set(m)
    return out


def _pack_block_diag(heads, gb):
    """Pack per-head weights, replicated block-diagonally over GB batch rows."""
    num_d = len(heads)
    hd, _ = heads[0][0].shape
    w1 = jnp.concatenate([h[0] for h in heads], axis=0)            # (D*Hd, C)
    b1 = jnp.concatenate([h[1] for h in heads], axis=0)            # (D*Hd,)
    w2 = jnp.zeros((num_d, num_d * hd), jnp.float32)
    for d, h in enumerate(heads):
        w2 = w2.at[d, d * hd:(d + 1) * hd].set(h[2])               # block-diag heads
    b2 = jnp.stack([jnp.asarray(h[3], jnp.float32) for h in heads])  # (D,)

    w1_bd = _block_diag(w1, gb)                                    # (gb*D*Hd, gb*C)
    w2_bd = _block_diag(w2, gb)                                    # (gb*D, gb*D*Hd)
    b1_bd = jnp.tile(b1, gb)[:, None]                              # (gb*D*Hd, 1)
    b2f_bd = jnp.tile(b2, gb)[:, None]                             # (gb*D, 1)
    b2r_bd = b2f_bd - 1.0                                          # LSGAN target fold
    return (w1_bd.astype(jnp.bfloat16), b1_bd.astype(jnp.float32),
            w2_bd.astype(jnp.bfloat16), b2f_bd, b2r_bd)


# ----------------------------------------------------------------------------
# Public entry point: DiscriminatorLoss.forward(y, y_hat)
# ----------------------------------------------------------------------------
def discriminator_loss(heads, y, y_hat, *, tile_n=8192):
    b, c, h, w = y.shape
    hw = h * w
    gb = _pick_group(b, c)

    # Layout-preserving reshape (row = batch*C + channel) -- NO XLA transpose.
    xr = y.reshape(b * c, hw).astype(jnp.float32)
    xf = y_hat.reshape(b * c, hw).astype(jnp.float32)

    tn, hw_pad = _pick_tile(hw, tile_n)
    need_mask = hw_pad != hw
    if need_mask:
        pad = hw_pad - hw
        xr = jnp.pad(xr, ((0, 0), (0, pad)))
        xf = jnp.pad(xf, ((0, 0), (0, pad)))

    w1_bd, b1_bd, w2_bd, b2f_bd, b2r_bd = _pack_block_diag(heads, gb)
    m1, k1 = w1_bd.shape          # (gb*D*Hd, gb*C)
    m2 = w2_bd.shape[0]           # gb*D

    nb = b // gb
    nj = hw_pad // tn
    inv_n = 1.0 / float(b * hw)   # every head's score map has B*H*W elements

    out = pl.pallas_call(
        functools.partial(_fused_d_loss_kernel,
                          n_valid=hw, tn=tn, need_mask=need_mask),
        out_shape=jax.ShapeDtypeStruct((nb, 1, 1), jnp.float32),
        grid=(nb, nj),
        in_specs=[
            pl.BlockSpec((k1, tn), lambda bi, j: (bi, j)),   # fake tile
            pl.BlockSpec((k1, tn), lambda bi, j: (bi, j)),   # real tile
            pl.BlockSpec((m1, k1), lambda bi, j: (0, 0)),    # W1 block-diag (resident)
            pl.BlockSpec((m1, 1), lambda bi, j: (0, 0)),     # b1
            pl.BlockSpec((m2, m1), lambda bi, j: (0, 0)),    # W2 block-diag
            pl.BlockSpec((m2, 1), lambda bi, j: (0, 0)),     # b2 (fake)
            pl.BlockSpec((m2, 1), lambda bi, j: (0, 0)),     # b2 - 1 (real)
        ],
        out_specs=pl.BlockSpec((1, 1, 1), lambda bi, j: (bi, 0, 0)),
        scratch_shapes=[pltpu.VMEM((m2, tn), jnp.float32)],
        compiler_params=pltpu.CompilerParams(
            # outer batch-chunk axis is parallel (v7x megacore can split it);
            # inner axis is the reduction over HW tiles.
            dimension_semantics=("parallel", "arbitrary"),
            vmem_limit_bytes=32 * 1024 * 1024),
    )(xf, xr, w1_bd, b1_bd, w2_bd, b2f_bd, b2r_bd)

    return jnp.sum(out) * inv_n


# ----------------------------------------------------------------------------
# Synthetic multi-discriminator parameters (`md` is external in PyTorch).
# TODO(synk): the real `md` is an arbitrary nn.Module; this deterministic
# num_d-head 1x1-conv -> LeakyReLU(0.2) -> 1x1-conv discriminator stands in.
# ----------------------------------------------------------------------------
def make_md_params(key, in_channels, hidden, num_d):
    heads = []
    for d in range(num_d):
        k1, k2, key = jax.random.split(key, 3)
        w1 = (jax.random.normal(k1, (hidden, in_channels), jnp.float32)
              / jnp.sqrt(in_channels))                        # (Hd, C)
        b1 = jnp.full((hidden,), 0.01 * (d + 1), jnp.float32)
        w2 = (jax.random.normal(k2, (hidden,), jnp.float32)
              / jnp.sqrt(hidden))                             # (Hd,)
        b2 = jnp.float32(0.02 * (d + 1))
        heads.append((w1, b1, w2, b2))
    return heads


# Pure-JAX reference (module semantics; same bf16 MXU-operand cast as kernel).
def discriminator_loss_ref(heads, y, y_hat):
    b, c, h, w = y.shape
    xr = jnp.transpose(y, (1, 0, 2, 3)).reshape(c, -1).astype(jnp.float32)
    xf = jnp.transpose(y_hat, (1, 0, 2, 3)).reshape(c, -1).astype(jnp.float32)

    def scores(p, x):
        w1, b1, w2, b2 = p
        hh = jnp.dot(w1.astype(jnp.bfloat16), x.astype(jnp.bfloat16),
                     preferred_element_type=jnp.float32) + b1[:, None]
        hh = jnp.maximum(hh, 0.2 * hh)
        return jnp.dot(w2.astype(jnp.bfloat16), hh.astype(jnp.bfloat16),
                       preferred_element_type=jnp.float32) + b2

    loss = 0.0
    for p in heads:
        loss = loss + jnp.mean(scores(p, xf) ** 2)
        loss = loss + jnp.mean((1.0 - scores(p, xr)) ** 2)
    return loss


if __name__ == "__main__":
    B, C, H, W = 4, 4, 16, 16
    hidden, num_d = 32, 2

    key = jax.random.PRNGKey(0)
    k_y, k_yh, k_y2, k_y2h, k_md = jax.random.split(key, 5)
    y = jax.random.normal(k_y, (B, C, H, W), jnp.float32)
    y_hat = jax.random.normal(k_yh, (B, C, H, W), jnp.float32)
    heads = make_md_params(k_md, C, hidden, num_d)

    # tile_n=128 -> grid (2, 2): exercises the 'parallel' batch-chunk axis and
    # the per-chunk accumulator across the 'arbitrary' reduction axis.
    loss = jax.block_until_ready(discriminator_loss(heads, y, y_hat, tile_n=128))
    ref = jax.block_until_ready(discriminator_loss_ref(heads, y, y_hat))
    assert jnp.allclose(loss, ref, rtol=1e-4, atol=1e-5), (loss, ref)

    # Unaligned spatial size (H*W = 240) -> exercises the pad + in-kernel mask path.
    y2 = jax.random.normal(k_y2, (B, C, 16, 15), jnp.float32)
    y2_hat = jax.random.normal(k_y2h, (B, C, 16, 15), jnp.float32)
    loss2 = jax.block_until_ready(discriminator_loss(heads, y2, y2_hat, tile_n=128))
    ref2 = jax.block_until_ready(discriminator_loss_ref(heads, y2, y2_hat))
    assert jnp.allclose(loss2, ref2, rtol=1e-4, atol=1e-5), (loss2, ref2)

    print("KERNEL_OK")
</pallas_src>

<mosaic_0001>
module attributes {stable_mosaic.version = 11 : i64} {
  func.func @_fused_d_loss_kernel(%arg0: i32, %arg1: i32, %arg2: memref<8x128xf32, #tpu.memory_space<vmem>>, %arg3: memref<8x128xf32, #tpu.memory_space<vmem>>, %arg4: memref<128x8xbf16, #tpu.memory_space<vmem>>, %arg5: memref<128x1xf32, #tpu.memory_space<vmem>>, %arg6: memref<4x128xbf16, #tpu.memory_space<vmem>>, %arg7: memref<4x1xf32, #tpu.memory_space<vmem>>, %arg8: memref<4x1xf32, #tpu.memory_space<vmem>>, %arg9: memref<1x1x1xf32, #tpu.memory_space<vmem>>, %arg10: memref<4x128xf32, #tpu.memory_space<vmem>>) attributes {dimension_semantics = [#tpu.dimension_semantics<parallel>, #tpu.dimension_semantics<arbitrary>], iteration_bounds = array<i64: 2, 2>, scalar_prefetch = 0 : i64, scratch_operands = 1 : i64, tpu.core_type = #tpu.core_type<tc>, window_params = [{transform_indices = @transform_0, window_bounds = array<i64: 8, 128>}, {transform_indices = @transform_1, window_bounds = array<i64: 8, 128>}, {pipeline_mode = #tpu.pipeline_mode<synchronous>, transform_indices = @transform_2, window_bounds = array<i64: 128, 8>}, {pipeline_mode = #tpu.pipeline_mode<synchronous>, transform_indices = @transform_3, window_bounds = array<i64: 128, 1>}, {pipeline_mode = #tpu.pipeline_mode<synchronous>, transform_indices = @transform_4, window_bounds = array<i64: 4, 128>}, {pipeline_mode = #tpu.pipeline_mode<synchronous>, transform_indices = @transform_5, window_bounds = array<i64: 4, 1>}, {pipeline_mode = #tpu.pipeline_mode<synchronous>, transform_indices = @transform_6, window_bounds = array<i64: 4, 1>}, {transform_indices = @transform_7, window_bounds = array<i64: 1, 1, 1>}]} {
    %c0_i32 = arith.constant 0 : i32
    %0 = arith.cmpi eq, %arg1, %c0_i32 : i32
    %1 = arith.extui %0 : i1 to i32
    %c0_i32_0 = arith.constant 0 : i32
    %2 = arith.cmpi ne, %1, %c0_i32_0 : i32
    scf.if %2 {
      %cst_24 = arith.constant 0.000000e+00 : f32
      %41 = vector.broadcast %cst_24 : f32 to vector<4x128xf32>
      %c0_25 = arith.constant 0 : index
      %c0_26 = arith.constant 0 : index
      %42 = vector.load %arg10[%c0_25, %c0_26] : memref<4x128xf32, #tpu.memory_space<vmem>>, vector<4x128xf32>
      tpu.vector_store %arg10[%c0_25, %c0_26], %41 {strides = array<i32>} : memref<4x128xf32, #tpu.memory_space<vmem>>, vector<4x128xf32>,
    } else {
    }
    %c0 = arith.constant 0 : index
    %c0_1 = arith.constant 0 : index
    %3 = vector.load %arg4[%c0, %c0_1] : memref<128x8xbf16, #tpu.memory_space<vmem>>, vector<128x8xbf16>
    %c0_2 = arith.constant 0 : index
    %c0_3 = arith.constant 0 : index
    %4 = vector.load %arg5[%c0_2, %c0_3] : memref<128x1xf32, #tpu.memory_space<vmem>>, vector<128x1xf32>
    %c0_4 = arith.constant 0 : index
    %c0_5 = arith.constant 0 : index
    %5 = vector.load %arg6[%c0_4, %c0_5] : memref<4x128xbf16, #tpu.memory_space<vmem>>, vector<4x128xbf16>
    %c0_6 = arith.constant 0 : index
    %c0_7 = arith.constant 0 : index
    %6 = vector.load %arg7[%c0_6, %c0_7] : memref<4x1xf32, #tpu.memory_space<vmem>>, vector<4x1xf32>
    %c0_8 = arith.constant 0 : index
    %c0_9 = arith.constant 0 : index
    %7 = vector.load %arg8[%c0_8, %c0_9] : memref<4x1xf32, #tpu.memory_space<vmem>>, vector<4x1xf32>
    %c0_10 = arith.constant 0 : index
    %c0_11 = arith.constant 0 : index
    %8 = vector.load %arg2[%c0_10, %c0_11] : memref<8x128xf32, #tpu.memory_space<vmem>>, vector<8x128xf32>
    %9 = arith.truncf %8 : vector<8x128xf32> to vector<8x128xbf16>
    %cst = arith.constant dense<0.000000e+00> : vector<128x128xf32>
    %10 = tpu.matmul %3, %9, %cst {dimension_numbers = #tpu.dot_dimension_numbers<[1], [0], [0], [1], [0, 0, 1, 1], [], []>} : vector<128x8xbf16>, vector<8x128xbf16>, vector<128x128xf32> -> vector<128x128xf32>
    %11 = vector.broadcast %4 : vector<128x1xf32> to vector<128x128xf32>
    %12 = arith.addf %10, %11 : vector<128x128xf32>
    %cst_12 = arith.constant 2.000000e-01 : f32
    %13 = vector.broadcast %cst_12 : f32 to vector<128x128xf32>
    %14 = arith.mulf %13, %12 : vector<128x128xf32>
    %15 = arith.maximumf %12, %14 : vector<128x128xf32>
    %16 = arith.truncf %15 : vector<128x128xf32> to vector<128x128xbf16>
    %cst_13 = arith.constant dense<0.000000e+00> : vector<4x128xf32>
    %17 = tpu.matmul %5, %16, %cst_13 {dimension_numbers = #tpu.dot_dimension_numbers<[1], [0], [0], [1], [0, 0, 1, 1], [], []>} : vector<4x128xbf16>, vector<128x128xbf16>, vector<4x128xf32> -> vector<4x128xf32>
    %18 = vector.broadcast %6 : vector<4x1xf32> to vector<4x128xf32>
    %19 = arith.addf %17, %18 : vector<4x128xf32>
    %c0_14 = arith.constant 0 : index
    %c0_15 = arith.constant 0 : index
    %20 = vector.load %arg3[%c0_14, %c0_15] : memref<8x128xf32, #tpu.memory_space<vmem>>, vector<8x128xf32>
    %21 = arith.truncf %20 : vector<8x128xf32> to vector<8x128xbf16>
    %cst_16 = arith.constant dense<0.000000e+00> : vector<128x128xf32>
    %22 = tpu.matmul %3, %21, %cst_16 {dimension_numbers = #tpu.dot_dimension_numbers<[1], [0], [0], [1], [0, 0, 1, 1], [], []>} : vector<128x8xbf16>, vector<8x128xbf16>, vector<128x128xf32> -> vector<128x128xf32>
    %23 = vector.broadcast %4 : vector<128x1xf32> to vector<128x128xf32>
    %24 = arith.addf %22, %23 : vector<128x128xf32>
    %cst_17 = arith.constant 2.000000e-01 : f32
    %25 = vector.broadcast %cst_17 : f32 to vector<128x128xf32>
    %26 = arith.mulf %25, %24 : vector<128x128xf32>
    %27 = arith.maximumf %24, %26 : vector<128x128xf32>
    %28 = arith.truncf %27 : vector<128x128xf32> to vector<128x128xbf16>
    %cst_18 = arith.constant dense<0.000000e+00> : vector<4x128xf32>
    %29 = tpu.matmul %5, %28, %cst_18 {dimension_numbers = #tpu.dot_dimension_numbers<[1], [0], [0], [1], [0, 0, 1, 1], [], []>} : vector<4x128xbf16>, vector<128x128xbf16>, vector<4x128xf32> -> vector<4x128xf32>
    %30 = vector.broadcast %7 : vector<4x1xf32> to vector<4x128xf32>
    %31 = arith.addf %29, %30 : vector<4x128xf32>
    %32 = arith.mulf %19, %19 : vector<4x128xf32>
    %33 = arith.mulf %31, %31 : vector<4x128xf32>
    %34 = arith.addf %32, %33 : vector<4x128xf32>
    %c0_19 = arith.constant 0 : index
    %c0_20 = arith.constant 0 : index
    %35 = vector.load %arg10[%c0_19, %c0_20] : memref<4x128xf32, #tpu.memory_space<vmem>>, vector<4x128xf32>
    %36 = arith.addf %35, %34 : vector<4x128xf32>
    %c0_21 = arith.constant 0 : index
    %c0_22 = arith.constant 0 : index
    %37 = vector.load %arg10[%c0_21, %c0_22] : memref<4x128xf32, #tpu.memory_space<vmem>>, vector<4x128xf32>
    tpu.vector_store %arg10[%c0_21, %c0_22], %36 {strides = array<i32>} : memref<4x128xf32, #tpu.memory_space<vmem>>, vector<4x128xf32>,
    %c1_i32 = arith.constant 1 : i32
    %38 = arith.cmpi eq, %arg1, %c1_i32 : i32
    %39 = arith.extui %38 : i1 to i32
    %c0_i32_23 = arith.constant 0 : i32
    %40 = arith.cmpi ne, %39, %c0_i32_23 : i32
    scf.if %40 {
      %c0_24 = arith.constant 0 : index
      %c0_25 = arith.constant 0 : index
      %41 = vector.load %arg10[%c0_24, %c0_25] : memref<4x128xf32, #tpu.memory_space<vmem>>, vector<4x128xf32>
      %42 = vector.shape_cast %41 : vector<4x128xf32> to vector<1x4x128xf32>
      %cst_26 = arith.constant dense<0.000000e+00> : vector<1xf32>
      %43 = vector.multi_reduction <add>, %42, %cst_26 [1, 2] : vector<1x4x128xf32> to vector<1xf32>
      %44 = vector.shape_cast %43 : vector<1xf32> to vector<1x1x1xf32>
      %45 = vector.extract %44[0, 0, 0] : f32 from vector<1x1x1xf32>
      %46 = vector.broadcast %45 : f32 to vector<1x1x1xf32>
      %c0_27 = arith.constant 0 : index
      %c0_28 = arith.constant 0 : index
      %c0_29 = arith.constant 0 : index
      %47 = vector.load %arg9[%c0_27, %c0_28, %c0_29] : memref<1x1x1xf32, #tpu.memory_space<vmem>>, vector<1x1x1xf32>
      tpu.vector_store %arg9[%c0_27, %c0_28, %c0_29], %46 {strides = array<i32>} : memref<1x1x1xf32, #tpu.memory_space<vmem>>, vector<1x1x1xf32>,
    } else {
    }
    return
  }
  func.func @transform_0(%arg0: i32, %arg1: i32) -> (i32, i32) {
    %c0_i32 = arith.constant 0 : i32
    return %arg0, %arg1 : i32, i32
  }
  func.func @transform_1(%arg0: i32, %arg1: i32) -> (i32, i32) {
    %c0_i32 = arith.constant 0 : i32
    return %arg0, %arg1 : i32, i32
  }
  func.func @transform_2(%arg0: i32, %arg1: i32) -> (i32, i32) {
    %c0_i32 = arith.constant 0 : i32
    %c0_i32_0 = arith.constant 0 : i32
    %c0_i32_1 = arith.constant 0 : i32
    return %c0_i32, %c0_i32_0 : i32, i32
  }
  func.func @transform_3(%arg0: i32, %arg1: i32) -> (i32, i32) {
    %c0_i32 = arith.constant 0 : i32
    %c0_i32_0 = arith.constant 0 : i32
    %c0_i32_1 = arith.constant 0 : i32
    return %c0_i32, %c0_i32_0 : i32, i32
  }
  func.func @transform_4(%arg0: i32, %arg1: i32) -> (i32, i32) {
    %c0_i32 = arith.constant 0 : i32
    %c0_i32_0 = arith.constant 0 : i32
    %c0_i32_1 = arith.constant 0 : i32
    return %c0_i32, %c0_i32_0 : i32, i32
  }
  func.func @transform_5(%arg0: i32, %arg1: i32) -> (i32, i32) {
    %c0_i32 = arith.constant 0 : i32
    %c0_i32_0 = arith.constant 0 : i32
    %c0_i32_1 = arith.constant 0 : i32
    return %c0_i32, %c0_i32_0 : i32, i32
  }
  func.func @transform_6(%arg0: i32, %arg1: i32) -> (i32, i32) {
    %c0_i32 = arith.constant 0 : i32
    %c0_i32_0 = arith.constant 0 : i32
    %c0_i32_1 = arith.constant 0 : i32
    return %c0_i32, %c0_i32_0 : i32, i32
  }
  func.func @transform_7(%arg0: i32, %arg1: i32) -> (i32, i32, i32) {
    %c0_i32 = arith.constant 0 : i32
    %c0_i32_0 = arith.constant 0 : i32
    %c0_i32_1 = arith.constant 0 : i32
    return %arg0, %c0_i32, %c0_i32_0 : i32, i32, i32
  }
}

</mosaic_0001>

<llo_original>
// kernel: tpu_custom_call.1
$region0: #{tpu_custom_call.1}
  #allocation0 [shape = 'u32[]', space=smem, size = 0x4, offset = 0x4, fixed_abs, tag = 'smem constant byte address 0x4 - core index']
  #allocation1 [shape = 'u32[144,128]{1,0:T(1,128)}', space=vmem, size = 0x12000, scoped, tag = 'internal scratch']
  #allocation2 [shape = 'f32[4,128]{1,0:T(4,128)}', space=vmem, size = 0x800, scoped, tag = 'scratch operand']
  %s0 = inlined_call_operand.vmem [shape: f32[16,256], index: 0, kind: input, shape index: {}]
  %s1 = inlined_call_operand.vmem [shape: f32[16,256], index: 1, kind: input, shape index: {}]
  %s2 = inlined_call_operand.vmem [shape: bf16[128,8], index: 2, kind: input, shape index: {}]
  %s3 = inlined_call_operand.vmem [shape: f32[128,1], index: 3, kind: input, shape index: {}]
  %s4 = inlined_call_operand.vmem [shape: bf16[4,128], index: 4, kind: input, shape index: {}]
  %s5 = inlined_call_operand.vmem [shape: f32[4,1], index: 5, kind: input, shape index: {}]
  %s6 = inlined_call_operand.vmem [shape: f32[4,1], index: 6, kind: input, shape index: {}]
  %s7 = inlined_call_operand.vmem [shape: f32[2,1,1], index: 7, kind: output, shape index: {}]
  %s8 = sld [smem:[#allocation0]]
  $region69: #{tpu_custom_call.1} parent=0
    _
  %s10 = ssub.s32 1, %s8
  %s11 = scalar_select 0, %s10, %s8
  loop: start=0, step=1, limit=6
  $region2: #{tpu_custom_call.1} parent=0 // loop_pre_header
    _
  $region3: #{tpu_custom_call.1} parent=0 // loop_header
    %s13 = sphi 0, %s17
    %p14 = scmp.ge.s32.totalorder %s13, 6
    %s20 = sphi 0, %s32
    %s21 = sphi 0, %s28
    %s22 = sphi 0, %s20
    %s23 = sphi 0, %s21
    %s24 = sphi 0, %s22
    %s25 = sphi 0, %s23
    %s37 = sphi 0, %s39
    %s40 = sphi 0, %s37
    %s41 = sphi 0, %s40
    %s57 = sphi 0, %s41
    %s65 = sphi 0, %s67
    %s68 = sphi 0, %s65
    %s69 = sphi 0, %s68
    %s85 = sphi 0, %s69
    %s89 = sphi 0, %s89
    %s91 = sphi 0, %s89
    %s92 = sphi 0, %s91
    %s106 = sphi 0, %s92
    %s110 = sphi 0, %s110
    %s112 = sphi 0, %s110
    %s113 = sphi 0, %s112
    %s127 = sphi 0, %s113
    %s131 = sphi 0, %s131
    %s133 = sphi 0, %s131
    %s134 = sphi 0, %s133
    %s148 = sphi 0, %s134
    %s152 = sphi 0, %s152
    %s154 = sphi 0, %s152
    %s155 = sphi 0, %s154
    %s169 = sphi 0, %s155
    %s173 = sphi 0, %s173
    %s175 = sphi 0, %s173
    %s176 = sphi 0, %s175
    %s190 = sphi 0, %s176
    %s196 = sphi 0, %s198
    %s199 = sphi 0, %s196
    %s200 = sphi 0, %s199
    %s216 = sphi 0, %s200
  $region4: #{tpu_custom_call.1} parent=0 // loop_header_branch
    %16 = sbr.rel (%p14) target = $region8
  $region5: #{tpu_custom_call.1} parent=0 // loop_body
    %s18 = ssub.s32 %s13, 1
    %s19 = ssub.s32 %s13, 2
    %s26 = sadd.s32 1, %s21
    %p27 = scmp.ge.s32.totalorder %s26, 2
    %s28 = scalar_select %p27, 0, %s26
    %s29 = sadd.s32 1, %s20
    %s30 = scalar_select %p27, %s29, %s20
    %p31 = scmp.ge.s32.totalorder %s30, 2
    %s32 = scalar_select %p31, 0, %s30
    %s33 = ssub.s32 %s20, %s32
    %s34 = ssub.s32 %s21, %s28
    %s35 = sor.u32 %s33, %s34
    %p36 = scmp.eq.s32.totalorder %s35, 0
    %s38 = sadd.s32 %s37, 1
    %s39 = scalar_select %p36, %s37, %s38
    %p42 = pneg %p36
    %p43 = scmp.eq.s32.totalorder %s13, 3
    %p44 = por %p42, %p43
    %p45 = scmp.ne.s32.totalorder %s37, %s40
    %p46 = scmp.eq.s32.totalorder %s13, 0
    %p47 = por %p45, %p46
    %p48 = scmp.ne.s32.totalorder %s37, %s40
    %p49 = scmp.eq.s32.totalorder %s18, 3
    %p50 = por %p48, %p49
    %p51 = scmp.ne.s32.totalorder %s40, %s41
    %p52 = scmp.eq.s32.totalorder %s18, 0
    %p53 = por %p51, %p52
    %p54 = scmp.ne.s32.totalorder %s40, %s41
    %p55 = scmp.eq.s32.totalorder %s19, 3
    %p56 = por %p54, %p55
    %p58 = scmp.ne.s32.totalorder %s41, %s57
    %p59 = scmp.eq.s32.totalorder %s19, 0
    %p60 = por %p58, %p59
    %s61 = ssub.s32 %s20, %s32
    %s62 = ssub.s32 %s21, %s28
    %s63 = sor.u32 %s61, %s62
    %p64 = scmp.eq.s32.totalorder %s63, 0
    %s66 = sadd.s32 %s65, 1
    %s67 = scalar_select %p64, %s65, %s66
    %p70 = pneg %p64
    %p71 = scmp.eq.s32.totalorder %s13, 3
    %p72 = por %p70, %p71
    %p73 = scmp.ne.s32.totalorder %s65, %s68
    %p74 = scmp.eq.s32.totalorder %s13, 0
    %p75 = por %p73, %p74
    %p76 = scmp.ne.s32.totalorder %s65, %s68
    %p77 = scmp.eq.s32.totalorder %s18, 3
    %p78 = por %p76, %p77
    %p79 = scmp.ne.s32.totalorder %s68, %s69
    %p80 = scmp.eq.s32.totalorder %s18, 0
    %p81 = por %p79, %p80
    %p82 = scmp.ne.s32.totalorder %s68, %s69
    %p83 = scmp.eq.s32.totalorder %s19, 3
    %p84 = por %p82, %p83
    %p86 = scmp.ne.s32.totalorder %s69, %s85
    %p87 = scmp.eq.s32.totalorder %s19, 0
    %p88 = por %p86, %p87
    %s90 = sadd.s32 %s89, 1
    %p93 = scmp.eq.s32.totalorder %s13, 3
    %p94 = scmp.ne.s32.totalorder %s89, %s91
    %p95 = scmp.eq.s32.totalorder %s13, 0
    %p96 = por %p94, %p95
    %p97 = scmp.ne.s32.totalorder %s89, %s91
    %p98 = scmp.eq.s32.totalorder %s18, 3
    %p99 = por %p97, %p98
    %p100 = scmp.ne.s32.totalorder %s91, %s92
    %p101 = scmp.eq.s32.totalorder %s18, 0
    %p102 = por %p100, %p101
    %p103 = scmp.ne.s32.totalorder %s91, %s92
    %p104 = scmp.eq.s32.totalorder %s19, 3
    %p105 = por %p103, %p104
    %p107 = scmp.ne.s32.totalorder %s92, %s106
    %p108 = scmp.eq.s32.totalorder %s19, 0
    %p109 = por %p107, %p108
    %s111 = sadd.s32 %s110, 1
    %p114 = scmp.eq.s32.totalorder %s13, 3
    %p115 = scmp.ne.s32.totalorder %s110, %s112
    %p116 = scmp.eq.s32.totalorder %s13, 0
    %p117 = por %p115, %p116
    %p118 = scmp.ne.s32.totalorder %s110, %s112
    %p119 = scmp.eq.s32.totalorder %s18, 3
    %p120 = por %p118, %p119
    %p121 = scmp.ne.s32.totalorder %s112, %s113
    %p122 = scmp.eq.s32.totalorder %s18, 0
    %p123 = por %p121, %p122
    %p124 = scmp.ne.s32.totalorder %s112, %s113
    %p125 = scmp.eq.s32.totalorder %s19, 3
    %p126 = por %p124, %p125
    %p128 = scmp.ne.s32.totalorder %s113, %s127
    %p129 = scmp.eq.s32.totalorder %s19, 0
    %p130 = por %p128, %p129
    %s132 = sadd.s32 %s131, 1
    %p135 = scmp.eq.s32.totalorder %s13, 3
    %p136 = scmp.ne.s32.totalorder %s131, %s133
    %p137 = scmp.eq.s32.totalorder %s13, 0
    %p138 = por %p136, %p137
    %p139 = scmp.ne.s32.totalorder %s131, %s133
    %p140 = scmp.eq.s32.totalorder %s18, 3
    %p141 = por %p139, %p140
    %p142 = scmp.ne.s32.totalorder %s133, %s134
    %p143 = scmp.eq.s32.totalorder %s18, 0
    %p144 = por %p142, %p143
    %p145 = scmp.ne.s32.totalorder %s133, %s134
    %p146 = scmp.eq.s32.totalorder %s19, 3
    %p147 = por %p145, %p146
    %p149 = scmp.ne.s32.totalorder %s134, %s148
    %p150 = scmp.eq.s32.totalorder %s19, 0
    %p151 = por %p149, %p150
    %s153 = sadd.s32 %s152, 1
    %p156 = scmp.eq.s32.totalorder %s13, 3
    %p157 = scmp.ne.s32.totalorder %s152, %s154
    %p158 = scmp.eq.s32.totalorder %s13, 0
    %p159 = por %p157, %p158
    %p160 = scmp.ne.s32.totalorder %s152, %s154
    %p161 = scmp.eq.s32.totalorder %s18, 3
    %p162 = por %p160, %p161
    %p163 = scmp.ne.s32.totalorder %s154, %s155
    %p164 = scmp.eq.s32.totalorder %s18, 0
    %p165 = por %p163, %p164
    %p166 = scmp.ne.s32.totalorder %s154, %s155
    %p167 = scmp.eq.s32.totalorder %s19, 3
    %p168 = por %p166, %p167
    %p170 = scmp.ne.s32.totalorder %s155, %s169
    %p171 = scmp.eq.s32.totalorder %s19, 0
    %p172 = por %p170, %p171
    %s174 = sadd.s32 %s173, 1
    %p177 = scmp.eq.s32.totalorder %s13, 3
    %p178 = scmp.ne.s32.totalorder %s173, %s175
    %p179 = scmp.eq.s32.totalorder %s13, 0
    %p180 = por %p178, %p179
    %p181 = scmp.ne.s32.totalorder %s173, %s175
    %p182 = scmp.eq.s32.totalorder %s18, 3
    %p183 = por %p181, %p182
    %p184 = scmp.ne.s32.totalorder %s175, %s176
    %p185 = scmp.eq.s32.totalorder %s18, 0
    %p186 = por %p184, %p185
    %p187 = scmp.ne.s32.totalorder %s175, %s176
    %p188 = scmp.eq.s32.totalorder %s19, 3
    %p189 = por %p187, %p188
    %p191 = scmp.ne.s32.totalorder %s176, %s190
    %p192 = scmp.eq.s32.totalorder %s19, 0
    %p193 = por %p191, %p192
    %s194 = ssub.s32 %s20, %s32
    %p195 = scmp.eq.s32.totalorder %s194, 0
    %s197 = sadd.s32 %s196, 1
    %s198 = scalar_select %p195, %s196, %s197
    %p201 = pneg %p195
    %p202 = scmp.eq.s32.totalorder %s13, 3
    %p203 = por %p201, %p202
    %p204 = scmp.ne.s32.totalorder %s196, %s199
    %p205 = scmp.eq.s32.totalorder %s13, 0
    %p206 = por %p204, %p205
    %p207 = scmp.ne.s32.totalorder %s196, %s199
    %p208 = scmp.eq.s32.totalorder %s18, 3
    %p209 = por %p207, %p208
    %p210 = scmp.ne.s32.totalorder %s199, %s200
    %p211 = scmp.eq.s32.totalorder %s18, 0
    %p212 = por %p210, %p211
    %p213 = scmp.ne.s32.totalorder %s199, %s200
    %p214 = scmp.eq.s32.totalorder %s19, 3
    %p215 = por %p213, %p214
    %p217 = scmp.ne.s32.totalorder %s200, %s216
    %p218 = scmp.eq.s32.totalorder %s19, 0
    %p219 = por %p217, %p218
    %p220 = scmp.le.s32.totalorder 1, %s13
    %p221 = scmp.lt.s32.totalorder %s13, 5
    %p222 = pnand %p220, %p221
    %p223 = pneg %p222
    // Predicated region
    $region9: #{tpu_custom_call.1} parent=5 // pred_check
      _
    $region10: #{tpu_custom_call.1} parent=5 // pred_check_branch
      %225 = sbr.rel (%p222) target = $region12
    $region11: #{tpu_custom_call.1} parent=5 // pred_region
      %s226 = ssub.s32 %s13, 1
      // Predicated region
      $region13: #{tpu_custom_call.1} parent=11 // pred_check
        %p227 = pneg %p102
      $region14: #{tpu_custom_call.1} parent=11 // pred_check_branch
        %229 = sbr.rel (%p227) target = $region16
      $region15: #{tpu_custom_call.1} parent=11 // pred_region
        _
      $region16: #{tpu_custom_call.1} parent=11 // pred_fallthru
        _
      // Predicated region
      $region17: #{tpu_custom_call.1} parent=11 // pred_check
        %p230 = pneg %p123
      $region18: #{tpu_custom_call.1} parent=11 // pred_check_branch
        %232 = sbr.rel (%p230) target = $region20
      $region19: #{tpu_custom_call.1} parent=11 // pred_region
        _
      $region20: #{tpu_custom_call.1} parent=11 // pred_fallthru
        _
      // Predicated region
      $region21: #{tpu_custom_call.1} parent=11 // pred_check
        %p233 = pneg %p144
      $region22: #{tpu_custom_call.1} parent=11 // pred_check_branch
        %235 = sbr.rel (%p233) target = $region24
      $region23: #{tpu_custom_call.1} parent=11 // pred_region
        _
      $region24: #{tpu_custom_call.1} parent=11 // pred_fallthru
        _
      // Predicated region
      $region25: #{tpu_custom_call.1} parent=11 // pred_check
        %p236 = pneg %p165
      $region26: #{tpu_custom_call.1} parent=11 // pred_check_branch
        %238 = sbr.rel (%p236) target = $region28
      $region27: #{tpu_custom_call.1} parent=11 // pred_region
        _
      $region28: #{tpu_custom_call.1} parent=11 // pred_fallthru
        _
      // Predicated region
      $region29: #{tpu_custom_call.1} parent=11 // pred_check
        %p239 = pneg %p186
      $region30: #{tpu_custom_call.1} parent=11 // pred_check_branch
        %241 = sbr.rel (%p239) target = $region32
      $region31: #{tpu_custom_call.1} parent=11 // pred_region
        _
      $region32: #{tpu_custom_call.1} parent=11 // pred_fallthru
        _
    $region12: #{tpu_custom_call.1} parent=5 // pred_fallthru
      _
    %p242 = scmp.lt.s32.totalorder %s13, 4
    // Predicated region
    $region33: #{tpu_custom_call.1} parent=5 // pred_check
      %p243 = pneg %p242
    $region34: #{tpu_custom_call.1} parent=5 // pred_check_branch
      %245 = sbr.rel (%p243) target = $region36
    $region35: #{tpu_custom_call.1} parent=5 // pred_region
      // Predicated region
      $region37: #{tpu_custom_call.1} parent=35 // pred_check
        %p246 = pneg %p47
      $region38: #{tpu_custom_call.1} parent=35 // pred_check_branch
        %248 = sbr.rel (%p246) target = $region40
      $region39: #{tpu_custom_call.1} parent=35 // pred_region
        %p249 = scmp.lt.s32.totalorder %s20, 1
        %s250 = scalar_select %p249, %s20, 1
        %p251 = scmp.lt.s32.totalorder %s21, 1
        %s252 = scalar_select %p251, %s21, 1
        %s253 = smul.addr %s250, 2
        %s254 = sadd.s32 %s252, %s253
        %s255 = smul.addr %s254, 8
        %s256 = scalar_lea.vmem %s0, %s255
      $region40: #{tpu_custom_call.1} parent=35 // pred_fallthru
        _
      // Predicated region
      $region41: #{tpu_custom_call.1} parent=35 // pred_check
        %p257 = pneg %p75
      $region42: #{tpu_custom_call.1} parent=35 // pred_check_branch
        %259 = sbr.rel (%p257) target = $region44
      $region43: #{tpu_custom_call.1} parent=35 // pred_region
        %p260 = scmp.lt.s32.totalorder %s20, 1
        %s261 = scalar_select %p260, %s20, 1
        %p262 = scmp.lt.s32.totalorder %s21, 1
        %s263 = scalar_select %p262, %s21, 1
        %s264 = smul.addr %s261, 2
        %s265 = sadd.s32 %s263, %s264
        %s266 = smul.addr %s265, 8
        %s267 = scalar_lea.vmem %s1, %s266
      $region44: #{tpu_custom_call.1} parent=35 // pred_fallthru
        _
    $region36: #{tpu_custom_call.1} parent=5 // pred_fallthru
      _
    %p268 = scmp.le.s32.totalorder 1, %s13
    %p269 = scmp.lt.s32.totalorder %s13, 5
    %p270 = pnand %p268, %p269
    %p271 = pneg %p270
    // Predicated region
    $region45: #{tpu_custom_call.1} parent=5 // pred_check
      _
    $region46: #{tpu_custom_call.1} parent=5 // pred_check_branch
      %273 = sbr.rel (%p270) target = $region48
    $region47: #{tpu_custom_call.1} parent=5 // pred_region
      %s274 = ssub.s32 %s13, 1
      %p275 = scmp.lt.s32.totalorder %s22, 1
      %s276 = scalar_select %p275, %s22, 1
      %p277 = scmp.lt.s32.totalorder %s23, 1
      %s278 = scalar_select %p277, %s23, 1
      %s279 = smul.addr %s276, 2
      %s280 = sadd.s32 %s278, %s279
      %s281 = smul.addr %s280, 8
      %s282 = scalar_lea.vmem %s0, %s281
      %p283 = pneg %p53
      %p284 = pneg %p50
      %p285 = scmp.lt.s32.totalorder %s22, 1
      %s286 = scalar_select %p285, %s22, 1
      %p287 = scmp.lt.s32.totalorder %s23, 1
      %s288 = scalar_select %p287, %s23, 1
      %s289 = smul.addr %s286, 2
      %s290 = sadd.s32 %s288, %s289
      %s291 = smul.addr %s290, 8
      %s292 = scalar_lea.vmem %s1, %s291
      %p293 = pneg %p81
      %p294 = pneg %p78
      %p295 = pneg %p102
      %p296 = pneg %p99
      %p297 = pneg %p123
      %p298 = pneg %p120
      %p299 = pneg %p144
      %p300 = pneg %p141
      %p301 = pneg %p165
      %p302 = pneg %p162
      %p303 = pneg %p186
      %p304 = pneg %p183
      %p305 = pneg %p212
      %p306 = pneg %p209
      %p307 = scmp.lt.s32.totalorder %s22, 1
      %s308 = scalar_select %p307, %s22, 1
      %s309 = scalar_lea.vmem %s7, %s308
      %p310 = scmp.lt.s32.totalorder %s22, 1
      %s311 = scalar_select %p310, %s22, 1
      %p312 = scmp.lt.s32.totalorder %s23, 1
      %s313 = scalar_select %p312, %s23, 1
      %s314 = smul.addr %s311, 2
      %s315 = sadd.s32 %s313, %s314
      %s316 = smul.addr %s315, 8
      %s317 = scalar_lea.vmem %s0, %s316
      %p318 = scmp.lt.s32.totalorder %s22, 1
      %s319 = scalar_select %p318, %s22, 1
      %p320 = scmp.lt.s32.totalorder %s23, 1
      %s321 = scalar_select %p320, %s23, 1
      %s322 = smul.addr %s319, 2
      %s323 = sadd.s32 %s321, %s322
      %s324 = smul.addr %s323, 8
      %s325 = scalar_lea.vmem %s1, %s324
      %p326 = scmp.lt.s32.totalorder %s22, 1
      %s327 = scalar_select %p326, %s22, 1
      %s328 = scalar_lea.vmem %s7, %s327
      %p330 = scmp.eq.s32.totalorder %s23, 0
      // Predicated region
      $region49: #{tpu_custom_call.1} parent=47 // pred_check
        %p331 = pneg %p330
      $region50: #{tpu_custom_call.1} parent=47 // pred_check_branch
        %333 = sbr.rel (%p331) target = $region52
      $region51: #{tpu_custom_call.1} parent=47 // pred_region
        %334 = vst [vmem:[#allocation2] sm:$0xf] 0.0
      $region52: #{tpu_custom_call.1} parent=47 // pred_fallthru
        _
      %v335 = vld [vmem:[%s2] sm:$0xf]
      %v336 = vld [vmem:[%s2 + $0x4] sm:$0xf]
      %v337 = vld [vmem:[%s2 + $0x8] sm:$0xf]
      %v338 = vld [vmem:[%s2 + $0xc] sm:$0xf]
      %v339 = vld [vmem:[%s2 + $0x10] sm:$0xf]
      %v340 = vld [vmem:[%s2 + $0x14] sm:$0xf]
      %v341 = vld [vmem:[%s2 + $0x18] sm:$0xf]
      %v342 = vld [vmem:[%s2 + $0x1c] sm:$0xf]
      %v343 = vld [vmem:[%s2 + $0x20] sm:$0xf]
      %v344 = vld [vmem:[%s2 + $0x24] sm:$0xf]
      %v345 = vld [vmem:[%s2 + $0x28] sm:$0xf]
      %v346 = vld [vmem:[%s2 + $0x2c] sm:$0xf]
      %v347 = vld [vmem:[%s2 + $0x30] sm:$0xf]
      %v348 = vld [vmem:[%s2 + $0x34] sm:$0xf]
      %v349 = vld [vmem:[%s2 + $0x38] sm:$0xf]
      %v350 = vld [vmem:[%s2 + $0x3c] sm:$0xf]
      %v351 = vld [vmem:[%s3] sm:$0xff]
      %v352 = vld [vmem:[%s3 + $0x8] sm:$0xff]
      %v353 = vld [vmem:[%s3 + $0x10] sm:$0xff]
      %v354 = vld [vmem:[%s3 + $0x18] sm:$0xff]
      %v355 = vld [vmem:[%s3 + $0x20] sm:$0xff]
      %v356 = vld [vmem:[%s3 + $0x28] sm:$0xff]
      %v357 = vld [vmem:[%s3 + $0x30] sm:$0xff]
      %v358 = vld [vmem:[%s3 + $0x38] sm:$0xff]
      %v359 = vld [vmem:[%s3 + $0x40] sm:$0xff]
      %v360 = vld [vmem:[%s3 + $0x48] sm:$0xff]
      %v361 = vld [vmem:[%s3 + $0x50] sm:$0xff]
      %v362 = vld [vmem:[%s3 + $0x58] sm:$0xff]
      %v363 = vld [vmem:[%s3 + $0x60] sm:$0xff]
      %v364 = vld [vmem:[%s3 + $0x68] sm:$0xff]
      %v365 = vld [vmem:[%s3 + $0x70] sm:$0xff]
      %v366 = vld [vmem:[%s3 + $0x78] sm:$0xff]
      %v367 = vld [vmem:[%s4] sm:$0x3]
      %v368 = vld [vmem:[%s5] sm:$0xf]
      %v369 = vld [vmem:[%s6] sm:$0xf]
      %v370 = vld [vmem:[%s317] sm:$0xff]
      %v371 = vpack.c.bf16 %v370, %v370
      %373 = vset.pattern.permute.xlu0 0
      %374 = vperm.xlu0 %373, %v351
      %v375 = vpop.permute.xlu0 %374
      %378 = vset.pattern.permute.xlu0 0
      %379 = vperm.xlu0 %378, %v352
      %v380 = vpop.permute.xlu0 %379
      %383 = vset.pattern.permute.xlu0 0
      %384 = vperm.xlu0 %383, %v353
      %v385 = vpop.permute.xlu0 %384
      %388 = vset.pattern.permute.xlu0 0
      %389 = vperm.xlu0 %388, %v354
      %v390 = vpop.permute.xlu0 %389
      %393 = vset.pattern.permute.xlu0 0
      %394 = vperm.xlu0 %393, %v355
      %v395 = vpop.permute.xlu0 %394
      %398 = vset.pattern.permute.xlu0 0
      %399 = vperm.xlu0 %398, %v356
      %v400 = vpop.permute.xlu0 %399
      %403 = vset.pattern.permute.xlu0 0
      %404 = vperm.xlu0 %403, %v357
      %v405 = vpop.permute.xlu0 %404
      %408 = vset.pattern.permute.xlu0 0
      %409 = vperm.xlu0 %408, %v358
      %v410 = vpop.permute.xlu0 %409
      %413 = vset.pattern.permute.xlu0 0
      %414 = vperm.xlu0 %413, %v359
      %v415 = vpop.permute.xlu0 %414
      %418 = vset.pattern.permute.xlu0 0
      %419 = vperm.xlu0 %418, %v360
      %v420 = vpop.permute.xlu0 %419
      %423 = vset.pattern.permute.xlu0 0
      %424 = vperm.xlu0 %423, %v361
      %v425 = vpop.permute.xlu0 %424
      %428 = vset.pattern.permute.xlu0 0
      %429 = vperm.xlu0 %428, %v362
      %v430 = vpop.permute.xlu0 %429
      %433 = vset.pattern.permute.xlu0 0
      %434 = vperm.xlu0 %433, %v363
      %v435 = vpop.permute.xlu0 %434
      %438 = vset.pattern.permute.xlu0 0
      %439 = vperm.xlu0 %438, %v364
      %v440 = vpop.permute.xlu0 %439
      %443 = vset.pattern.permute.xlu0 0
      %444 = vperm.xlu0 %443, %v365
      %v445 = vpop.permute.xlu0 %444
      %448 = vset.pattern.permute.xlu0 0
      %449 = vperm.xlu0 %448, %v366
      %v450 = vpop.permute.xlu0 %449
      %v468 = vunpack.c.l.b16 %v335
      %v469 = vunpack.c.l.b16 %v336
      %v470 = vunpack.c.l.b16 %v337
      %v471 = vunpack.c.l.b16 %v338
      %v472 = vunpack.c.l.b16 %v339
      %v473 = vunpack.c.l.b16 %v340
      %v474 = vunpack.c.l.b16 %v341
      %v475 = vunpack.c.l.b16 %v342
      %v476 = vunpack.c.l.b16 %v343
      %v477 = vunpack.c.l.b16 %v344
      %v478 = vunpack.c.l.b16 %v345
      %v479 = vunpack.c.l.b16 %v346
      %v480 = vunpack.c.l.b16 %v347
      %v481 = vunpack.c.l.b16 %v348
      %v482 = vunpack.c.l.b16 %v349
      %v483 = vunpack.c.l.b16 %v350
      %v484 = vpack.c.b16 %v469, %v468
      %v485 = vpack.c.b16 %v471, %v470
      %v486 = vpack.c.b16 %v473, %v472
      %v487 = vpack.c.b16 %v475, %v474
      %v488 = vpack.c.b16 %v477, %v476
      %v489 = vpack.c.b16 %v479, %v478
      %v490 = vpack.c.b16 %v481, %v480
      %v491 = vpack.c.b16 %v483, %v482
      %vm492 = vcmask 64512
      %v494 = vsel %vm492, %v484, 0
      %v497 = vsel %vm492, %v485, 0
      %v500 = vsel %vm492, %v486, 0
      %v503 = vsel %vm492, %v487, 0
      %v506 = vsel %vm492, %v488, 0
      %v509 = vsel %vm492, %v489, 0
      %v512 = vsel %vm492, %v490, 0
      %v515 = vsel %vm492, %v491, 0
      %vm517 = vcmask 1043456
      %v519 = vsel %vm517, %v371, 0
      %521 = vmatprep.subr.bf16.mxu0 0
      %522 = vmatpush1.bf16.msra.mxu0 %v519
      %523 = vmatprep.subr.bf16.mxu0 0
      %524 = vmatpush1.bf16.msra.mxu0 0
      %525 = vmatprep.subr.bf16.mxu0 0
      %526 = vmatpush1.bf16.msra.mxu0 0
      %527 = vmatprep.subr.bf16.mxu0 0
      %528 = vmatpush1.bf16.msra.mxu0 0
      %529 = vmatprep.subr.bf16.mxu0 0
      %530 = vmatpush1.bf16.msra.mxu0 0
      %531 = vmatprep.subr.bf16.mxu0 0
      %532 = vmatpush1.bf16.msra.mxu0 0
      %533 = vmatprep.subr.bf16.mxu0 0
      %534 = vmatpush1.bf16.msra.mxu0 0
      %535 = vmatprep.subr.bf16.mxu0 0
      %536 = vmatpush1.bf16.msra.mxu0 0
      %537 = vmatprep.subr.bf16.mxu0 0
      %538 = vmatpush1.bf16.msra.mxu0 0
      %539 = vmatprep.subr.bf16.mxu0 0
      %540 = vmatpush1.bf16.msra.mxu0 0
      %541 = vmatprep.subr.bf16.mxu0 0
      %542 = vmatpush1.bf16.msra.mxu0 0
      %543 = vmatprep.subr.bf16.mxu0 0
      %544 = vmatpush1.bf16.msra.mxu0 0
      %545 = vmatprep.subr.bf16.mxu0 0
      %546 = vmatpush1.bf16.msra.mxu0 0
      %547 = vmatprep.subr.bf16.mxu0 0
      %548 = vmatpush1.bf16.msra.mxu0 0
      %549 = vmatprep.subr.bf16.mxu0 0
      %550 = vmatpush1.bf16.msra.mxu0 0
      %551 = vmatprep.subr.bf16.mxu0 0
      %552 = vmatpush1.bf16.msra.mxu0 0
      %553 = vmatprep.mubr.bf16.mxu0 0
      %554 = vmatmul.mubr.bf16.gmra.mrb[0].mxu0 %v494
      %v555 = vpop.f32.mrb[0].mxu0
      %v556 = vadd.f32 %v375, %v555
      %v557 = vpop.f32.mrb[0].mxu0
      %v558 = vpop.f32.mrb[0].mxu0
      %v559 = vadd.f32 %v380, %v558
      %v560 = vpop.f32.mrb[0].mxu0
      %561 = vmatprep.mubr.bf16.mxu0 0
      %562 = vmatmul.mubr.bf16.gmra.mrb[0].mxu0 %v497
      %v563 = vpop.f32.mrb[0].mxu0
      %v564 = vadd.f32 %v385, %v563
      %v565 = vpop.f32.mrb[0].mxu0
      %v566 = vpop.f32.mrb[0].mxu0
      %v567 = vadd.f32 %v390, %v566
      %v568 = vpop.f32.mrb[0].mxu0
      %569 = vmatprep.mubr.bf16.mxu0 0
      %570 = vmatmul.mubr.bf16.gmra.mrb[0].mxu0 %v500
      %v571 = vpop.f32.mrb[0].mxu0
      %v572 = vadd.f32 %v395, %v571
      %v573 = vpop.f32.mrb[0].mxu0
      %v574 = vpop.f32.mrb[0].mxu0
      %v575 = vadd.f32 %v400, %v574
      %v576 = vpop.f32.mrb[0].mxu0
      %577 = vmatprep.mubr.bf16.mxu0 0
      %578 = vmatmul.mubr.bf16.gmra.mrb[0].mxu0 %v503
      %v579 = vpop.f32.mrb[0].mxu0
      %v580 = vadd.f32 %v405, %v579
      %v581 = vpop.f32.mrb[0].mxu0
      %v582 = vpop.f32.mrb[0].mxu0
      %v583 = vadd.f32 %v410, %v582
      %v584 = vpop.f32.mrb[0].mxu0
      %585 = vmatprep.mubr.bf16.mxu0 0
      %586 = vmatmul.mubr.bf16.gmra.mrb[0].mxu0 %v506
      %v587 = vpop.f32.mrb[0].mxu0
      %v588 = vadd.f32 %v415, %v587
      %v589 = vpop.f32.mrb[0].mxu0
      %v590 = vpop.f32.mrb[0].mxu0
      %v591 = vadd.f32 %v420, %v590
      %v592 = vpop.f32.mrb[0].mxu0
      %593 = vmatprep.mubr.bf16.mxu0 0
      %594 = vmatmul.mubr.bf16.gmra.mrb[0].mxu0 %v509
      %v595 = vpop.f32.mrb[0].mxu0
      %v596 = vadd.f32 %v425, %v595
      %v597 = vpop.f32.mrb[0].mxu0
      %v598 = vpop.f32.mrb[0].mxu0
      %v599 = vadd.f32 %v430, %v598
      %v600 = vpop.f32.mrb[0].mxu0
      %601 = vmatprep.mubr.bf16.mxu0 0
      %602 = vmatmul.mubr.bf16.gmra.mrb[0].mxu0 %v512
      %v603 = vpop.f32.mrb[0].mxu0
      %v604 = vadd.f32 %v435, %v603
      %v605 = vpop.f32.mrb[0].mxu0
      %v606 = vpop.f32.mrb[0].mxu0
      %v607 = vadd.f32 %v440, %v606
      %v608 = vpop.f32.mrb[0].mxu0
      %609 = vmatprep.mubr.bf16.mxu0 0
      %610 = vmatmul.mubr.bf16.gmra.mrb[0].mxu0 %v515
      %v611 = vpop.f32.mrb[0].mxu0
      %v612 = vadd.f32 %v445, %v611
      %v613 = vpop.f32.mrb[0].mxu0
      %v614 = vpop.f32.mrb[0].mxu0
      %v615 = vadd.f32 %v450, %v614
      %v616 = vpop.f32.mrb[0].mxu0
      %617 = vdwg.mxu0
      %v618 = vmul.f32 %v556, 0.2
      %v619 = vmul.f32 %v559, 0.2
      %v620 = vmul.f32 %v564, 0.2
      %v621 = vmul.f32 %v567, 0.2
      %v622 = vmul.f32 %v572, 0.2
      %v623 = vmul.f32 %v575, 0.2
      %v624 = vmul.f32 %v580, 0.2
      %v625 = vmul.f32 %v583, 0.2
      %v626 = vmul.f32 %v588, 0.2
      %v627 = vmul.f32 %v591, 0.2
      %v628 = vmul.f32 %v596, 0.2
      %v629 = vmul.f32 %v599, 0.2
      %v630 = vmul.f32 %v604, 0.2
      %v631 = vmul.f32 %v607, 0.2
      %v632 = vmul.f32 %v612, 0.2
      %v633 = vmul.f32 %v615, 0.2
      %v634 = vmax.f32 %v556, %v618
      %v635 = vmax.f32 %v559, %v619
      %v636 = vmax.f32 %v564, %v620
      %v637 = vmax.f32 %v567, %v621
      %v638 = vmax.f32 %v572, %v622
      %v639 = vmax.f32 %v575, %v623
      %v640 = vmax.f32 %v580, %v624
      %v641 = vmax.f32 %v583, %v625
      %v642 = vmax.f32 %v588, %v626
      %v643 = vmax.f32 %v591, %v627
      %v644 = vmax.f32 %v596, %v628
      %v645 = vmax.f32 %v599, %v629
      %v646 = vmax.f32 %v604, %v630
      %v647 = vmax.f32 %v607, %v631
      %v648 = vmax.f32 %v612, %v632
      %v649 = vmax.f32 %v615, %v633
      %v650 = vpack.c.bf16 %v635, %v634
      %v651 = vpack.c.bf16 %v637, %v636
      %v652 = vpack.c.bf16 %v639, %v638
      %v653 = vpack.c.bf16 %v641, %v640
      %v654 = vpack.c.bf16 %v643, %v642
      %v655 = vpack.c.bf16 %v645, %v644
      %v656 = vpack.c.bf16 %v647, %v646
      %v657 = vpack.c.bf16 %v649, %v648
      %659 = vset.pattern.permute.xlu0 0
      %660 = vperm.xlu0 %659, %v368
      %v661 = vpop.permute.xlu0 %660
      %663 = vmatprep.subr.bf16.mxu0 0
      %664 = vmatpush1.bf16.msra.mxu0 %v650
      %665 = vmatprep.subr.bf16.mxu0 0
      %666 = vmatpush1.bf16.msra.mxu0 %v651
      %667 = vmatprep.subr.bf16.mxu0 0
      %668 = vmatpush1.bf16.msra.mxu0 %v652
      %669 = vmatprep.subr.bf16.mxu0 0
      %670 = vmatpush1.bf16.msra.mxu0 %v653
      %671 = vmatprep.subr.bf16.mxu0 0
      %672 = vmatpush1.bf16.msra.mxu0 %v654
      %673 = vmatprep.subr.bf16.mxu0 0
      %674 = vmatpush1.bf16.msra.mxu0 %v655
      %675 = vmatprep.subr.bf16.mxu0 0
      %676 = vmatpush1.bf16.msra.mxu0 %v656
      %677 = vmatprep.subr.bf16.mxu0 0
      %678 = vmatpush1.bf16.msra.mxu0 %v657
      %679 = vmatprep.subr.bf16.mxu0 0
      %680 = vmatpush1.bf16.msra.mxu0 0
      %681 = vmatprep.subr.bf16.mxu0 0
      %682 = vmatpush1.bf16.msra.mxu0 0
      %683 = vmatprep.subr.bf16.mxu0 0
      %684 = vmatpush1.bf16.msra.mxu0 0
      %685 = vmatprep.subr.bf16.mxu0 0
      %686 = vmatpush1.bf16.msra.mxu0 0
      %687 = vmatprep.subr.bf16.mxu0 0
      %688 = vmatpush1.bf16.msra.mxu0 0
      %689 = vmatprep.subr.bf16.mxu0 0
      %690 = vmatpush1.bf16.msra.mxu0 0
      %691 = vmatprep.subr.bf16.mxu0 0
      %692 = vmatpush1.bf16.msra.mxu0 0
      %693 = vmatprep.subr.bf16.mxu0 0
      %694 = vmatpush1.bf16.msra.mxu0 0
      %695 = vmatprep.mubr.bf16.mxu0 0
      %696 = vmatmul.mubr.bf16.gmra.mrb[0].mxu0 %v367
      %v697 = vpop.f32.mrb[0].mxu0
      %v698 = vadd.f32 %v661, %v697
      %v699 = vpop.f32.mrb[0].mxu0
      %v700 = vpop.f32.mrb[0].mxu0
      %v701 = vpop.f32.mrb[0].mxu0
      %702 = vdwg.mxu0
      %v703 = vld [vmem:[%s325] sm:$0xff]
      %v704 = vpack.c.bf16 %v703, %v703
      %v706 = vsel %vm517, %v704, 0
      %708 = vmatprep.subr.bf16.mxu0 0
      %709 = vmatpush1.bf16.msra.mxu0 %v706
      %710 = vmatprep.subr.bf16.mxu0 0
      %711 = vmatpush1.bf16.msra.mxu0 0
      %712 = vmatprep.subr.bf16.mxu0 0
      %713 = vmatpush1.bf16.msra.mxu0 0
      %714 = vmatprep.subr.bf16.mxu0 0
      %715 = vmatpush1.bf16.msra.mxu0 0
      %716 = vmatprep.subr.bf16.mxu0 0
      %717 = vmatpush1.bf16.msra.mxu0 0
      %718 = vmatprep.subr.bf16.mxu0 0
      %719 = vmatpush1.bf16.msra.mxu0 0
      %720 = vmatprep.subr.bf16.mxu0 0
      %721 = vmatpush1.bf16.msra.mxu0 0
      %722 = vmatprep.subr.bf16.mxu0 0
      %723 = vmatpush1.bf16.msra.mxu0 0
      %724 = vmatprep.subr.bf16.mxu0 0
      %725 = vmatpush1.bf16.msra.mxu0 0
      %726 = vmatprep.subr.bf16.mxu0 0
      %727 = vmatpush1.bf16.msra.mxu0 0
      %728 = vmatprep.subr.bf16.mxu0 0
      %729 = vmatpush1.bf16.msra.mxu0 0
      %730 = vmatprep.subr.bf16.mxu0 0
      %731 = vmatpush1.bf16.msra.mxu0 0
      %732 = vmatprep.subr.bf16.mxu0 0
      %733 = vmatpush1.bf16.msra.mxu0 0
      %734 = vmatprep.subr.bf16.mxu0 0
      %735 = vmatpush1.bf16.msra.mxu0 0
      %736 = vmatprep.subr.bf16.mxu0 0
      %737 = vmatpush1.bf16.msra.mxu0 0
      %738 = vmatprep.subr.bf16.mxu0 0
      %739 = vmatpush1.bf16.msra.mxu0 0
      %740 = vmatprep.mubr.bf16.mxu0 0
      %741 = vmatmul.mubr.bf16.gmra.mrb[0].mxu0 %v494
      %v742 = vpop.f32.mrb[0].mxu0
      %v743 = vadd.f32 %v375, %v742
      %v744 = vpop.f32.mrb[0].mxu0
      %v745 = vpop.f32.mrb[0].mxu0
      %v746 = vadd.f32 %v380, %v745
      %v747 = vpop.f32.mrb[0].mxu0
      %748 = vmatprep.mubr.bf16.mxu0 0
      %749 = vmatmul.mubr.bf16.gmra.mrb[0].mxu0 %v497
      %v750 = vpop.f32.mrb[0].mxu0
      %v751 = vadd.f32 %v385, %v750
      %v752 = vpop.f32.mrb[0].mxu0
      %v753 = vpop.f32.mrb[0].mxu0
      %v754 = vadd.f32 %v390, %v753
      %v755 = vpop.f32.mrb[0].mxu0
      %756 = vmatprep.mubr.bf16.mxu0 0
      %757 = vmatmul.mubr.bf16.gmra.mrb[0].mxu0 %v500
      %v758 = vpop.f32.mrb[0].mxu0
      %v759 = vadd.f32 %v395, %v758
      %v760 = vpop.f32.mrb[0].mxu0
      %v761 = vpop.f32.mrb[0].mxu0
      %v762 = vadd.f32 %v400, %v761
      %v763 = vpop.f32.mrb[0].mxu0
      %764 = vmatprep.mubr.bf16.mxu0 0
      %765 = vmatmul.mubr.bf16.gmra.mrb[0].mxu0 %v503
      %v766 = vpop.f32.mrb[0].mxu0
      %v767 = vadd.f32 %v405, %v766
      %v768 = vpop.f32.mrb[0].mxu0
      %v769 = vpop.f32.mrb[0].mxu0
      %v770 = vadd.f32 %v410, %v769
      %v771 = vpop.f32.mrb[0].mxu0
      %772 = vmatprep.mubr.bf16.mxu0 0
      %773 = vmatmul.mubr.bf16.gmra.mrb[0].mxu0 %v506
      %v774 = vpop.f32.mrb[0].mxu0
      %v775 = vadd.f32 %v415, %v774
      %v776 = vpop.f32.mrb[0].mxu0
      %v777 = vpop.f32.mrb[0].mxu0
      %v778 = vadd.f32 %v420, %v777
      %v779 = vpop.f32.mrb[0].mxu0
      %780 = vmatprep.mubr.bf16.mxu0 0
      %781 = vmatmul.mubr.bf16.gmra.mrb[0].mxu0 %v509
      %v782 = vpop.f32.mrb[0].mxu0
      %v783 = vadd.f32 %v425, %v782
      %v784 = vpop.f32.mrb[0].mxu0
      %v785 = vpop.f32.mrb[0].mxu0
      %v786 = vadd.f32 %v430, %v785
      %v787 = vpop.f32.mrb[0].mxu0
      %788 = vmatprep.mubr.bf16.mxu0 0
      %789 = vmatmul.mubr.bf16.gmra.mrb[0].mxu0 %v512
      %v790 = vpop.f32.mrb[0].mxu0
      %v791 = vadd.f32 %v435, %v790
      %v792 = vpop.f32.mrb[0].mxu0
      %v793 = vpop.f32.mrb[0].mxu0
      %v794 = vadd.f32 %v440, %v793
      %v795 = vpop.f32.mrb[0].mxu0
      %796 = vmatprep.mubr.bf16.mxu0 0
      %797 = vmatmul.mubr.bf16.gmra.mrb[0].mxu0 %v515
      %v798 = vpop.f32.mrb[0].mxu0
      %v799 = vadd.f32 %v445, %v798
      %v800 = vpop.f32.mrb[0].mxu0
      %v801 = vpop.f32.mrb[0].mxu0
      %v802 = vadd.f32 %v450, %v801
      %v803 = vpop.f32.mrb[0].mxu0
      %804 = vdwg.mxu0
      %v805 = vmul.f32 %v743, 0.2
      %v806 = vmul.f32 %v746, 0.2
      %v807 = vmul.f32 %v751, 0.2
      %v808 = vmul.f32 %v754, 0.2
      %v809 = vmul.f32 %v759, 0.2
      %v810 = vmul.f32 %v762, 0.2
      %v811 = vmul.f32 %v767, 0.2
      %v812 = vmul.f32 %v770, 0.2
      %v813 = vmul.f32 %v775, 0.2
      %v814 = vmul.f32 %v778, 0.2
      %v815 = vmul.f32 %v783, 0.2
      %v816 = vmul.f32 %v786, 0.2
      %v817 = vmul.f32 %v791, 0.2
      %v818 = vmul.f32 %v794, 0.2
      %v819 = vmul.f32 %v799, 0.2
      %v820 = vmul.f32 %v802, 0.2
      %v821 = vmax.f32 %v743, %v805
      %v822 = vmax.f32 %v746, %v806
      %v823 = vmax.f32 %v751, %v807
      %v824 = vmax.f32 %v754, %v808
      %v825 = vmax.f32 %v759, %v809
      %v826 = vmax.f32 %v762, %v810
      %v827 = vmax.f32 %v767, %v811
      %v828 = vmax.f32 %v770, %v812
      %v829 = vmax.f32 %v775, %v813
      %v830 = vmax.f32 %v778, %v814
      %v831 = vmax.f32 %v783, %v815
      %v832 = vmax.f32 %v786, %v816
      %v833 = vmax.f32 %v791, %v817
      %v834 = vmax.f32 %v794, %v818
      %v835 = vmax.f32 %v799, %v819
      %v836 = vmax.f32 %v802, %v820
      %v837 = vpack.c.bf16 %v822, %v821
      %v838 = vpack.c.bf16 %v824, %v823
      %v839 = vpack.c.bf16 %v826, %v825
      %v840 = vpack.c.bf16 %v828, %v827
      %v841 = vpack.c.bf16 %v830, %v829
      %v842 = vpack.c.bf16 %v832, %v831
      %v843 = vpack.c.bf16 %v834, %v833
      %v844 = vpack.c.bf16 %v836, %v835
      %846 = vset.pattern.permute.xlu0 0
      %847 = vperm.xlu0 %846, %v369
      %v848 = vpop.permute.xlu0 %847
      %850 = vmatprep.subr.bf16.mxu0 0
      %851 = vmatpush1.bf16.msra.mxu0 %v837
      %852 = vmatprep.subr.bf16.mxu0 0
      %853 = vmatpush1.bf16.msra.mxu0 %v838
      %854 = vmatprep.subr.bf16.mxu0 0
      %855 = vmatpush1.bf16.msra.mxu0 %v839
      %856 = vmatprep.subr.bf16.mxu0 0
      %857 = vmatpush1.bf16.msra.mxu0 %v840
      %858 = vmatprep.subr.bf16.mxu0 0
      %859 = vmatpush1.bf16.msra.mxu0 %v841
      %860 = vmatprep.subr.bf16.mxu0 0
      %861 = vmatpush1.bf16.msra.mxu0 %v842
      %862 = vmatprep.subr.bf16.mxu0 0
      %863 = vmatpush1.bf16.msra.mxu0 %v843
      %864 = vmatprep.subr.bf16.mxu0 0
      %865 = vmatpush1.bf16.msra.mxu0 %v844
      %866 = vmatprep.subr.bf16.mxu0 0
      %867 = vmatpush1.bf16.msra.mxu0 0
      %868 = vmatprep.subr.bf16.mxu0 0
      %869 = vmatpush1.bf16.msra.mxu0 0
      %870 = vmatprep.subr.bf16.mxu0 0
      %871 = vmatpush1.bf16.msra.mxu0 0
      %872 = vmatprep.subr.bf16.mxu0 0
      %873 = vmatpush1.bf16.msra.mxu0 0
      %874 = vmatprep.subr.bf16.mxu0 0
      %875 = vmatpush1.bf16.msra.mxu0 0
      %876 = vmatprep.subr.bf16.mxu0 0
      %877 = vmatpush1.bf16.msra.mxu0 0
      %878 = vmatprep.subr.bf16.mxu0 0
      %879 = vmatpush1.bf16.msra.mxu0 0
      %880 = vmatprep.subr.bf16.mxu0 0
      %881 = vmatpush1.bf16.msra.mxu0 0
      %882 = vmatprep.mubr.bf16.mxu0 0
      %883 = vmatmul.mubr.bf16.gmra.mrb[0].mxu0 %v367
      %v884 = vpop.f32.mrb[0].mxu0
      %v885 = vadd.f32 %v848, %v884
      %v886 = vpop.f32.mrb[0].mxu0
      %v887 = vpop.f32.mrb[0].mxu0
      %v888 = vpop.f32.mrb[0].mxu0
      %889 = vdwg.mxu0
      %v890 = vmul.f32 %v698, %v698
      %v891 = vmul.f32 %v885, %v885
      %v892 = vadd.f32 %v890, %v891
      %v893 = vld [vmem:[#allocation2] sm:$0xf]
      %v894 = vadd.f32 %v893, %v892
      %895 = vst [vmem:[#allocation2] sm:$0xf] %v894
      %p896 = scmp.eq.s32.totalorder %s23, 1
      // Predicated region
      $region53: #{tpu_custom_call.1} parent=47 // pred_check
        %p897 = pneg %p896
      $region54: #{tpu_custom_call.1} parent=47 // pred_check_branch
        %899 = sbr.rel (%p897) target = $region56
      $region55: #{tpu_custom_call.1} parent=47 // pred_region
        %v900 = vld [vmem:[#allocation2] sm:$0xf]
        %v901 = vsel %vm517, %v900, 0.0
        %902 = vadd.xlane.f32.xlu0 %v901
        %v903 = vpop.xlane.xlu0 %902
        %v904 = vrot.slane %v903, 4
        %v905 = vadd.f32 %v903, %v904
        %v906 = vrot.slane %v905, 2
        %v907 = vadd.f32 %v905, %v906
        %v908 = vrot.slane %v907, 1
        %v909 = vadd.f32 %v907, %v908
        %s910 = vtos %v909
        %v911 = vstv %s910
        %vm912 = vcmask 0
        %913 = vst.msk [vmem:[%s328] sm:$0x1] %vm912, %v911
      $region56: #{tpu_custom_call.1} parent=47 // pred_fallthru
        _
      %p914 = scmp.lt.s32.totalorder %s22, 1
      %s915 = scalar_select %p914, %s22, 1
      %s916 = scalar_lea.vmem %s7, %s915
      // Predicated region
      $region57: #{tpu_custom_call.1} parent=47 // pred_check
        %p917 = pneg %p209
      $region58: #{tpu_custom_call.1} parent=47 // pred_check_branch
        %919 = sbr.rel (%p917) target = $region60
      $region59: #{tpu_custom_call.1} parent=47 // pred_region
        _
      $region60: #{tpu_custom_call.1} parent=47 // pred_fallthru
        _
    $region48: #{tpu_custom_call.1} parent=5 // pred_fallthru
      _
    %p920 = scmp.le.s32.totalorder 2, %s13
    // Predicated region
    $region61: #{tpu_custom_call.1} parent=5 // pred_check
      %p921 = pneg %p920
    $region62: #{tpu_custom_call.1} parent=5 // pred_check_branch
      %923 = sbr.rel (%p921) target = $region64
    $region63: #{tpu_custom_call.1} parent=5 // pred_region
      %s924 = ssub.s32 %s13, 2
      // Predicated region
      $region65: #{tpu_custom_call.1} parent=63 // pred_check
        %p925 = pneg %p215
      $region66: #{tpu_custom_call.1} parent=63 // pred_check_branch
        %927 = sbr.rel (%p925) target = $region68
      $region67: #{tpu_custom_call.1} parent=63 // pred_region
        %p928 = scmp.lt.s32.totalorder %s24, 1
        %s929 = scalar_select %p928, %s24, 1
        %s930 = scalar_lea.vmem %s7, %s929
      $region68: #{tpu_custom_call.1} parent=63 // pred_fallthru
        _
    $region64: #{tpu_custom_call.1} parent=5 // pred_fallthru
      _
  $region6: #{tpu_custom_call.1} parent=0 // loop_footer
    %s17 = sadd.s32 1, %s13
  $region7: #{tpu_custom_call.1} parent=0 // loop_footer_branch
    %12 = sbr.rel target = $region3
  $region8: #{tpu_custom_call.1} parent=0 // loop_exit
    _

</llo_original>
